<compile_context>
chip_gen: v6e
topology: v6e:2x2x1
jax: 0.10.0
libtpu: 0.0.40
codegen_flags: <defaults>
</compile_context>

<pallas_src>
import math

import jax
import jax.numpy as jnp
from jax.experimental import pallas as pl
from jax.experimental.pallas import tpu as pltpu

NEG_INF = -1e30  # stand-in for float('-inf') in the causal mask (same softmax result)


def _round_up(x, m):
    return (x + m - 1) // m * m


# ---------------------------------------------------------------------------
# helpers (used inside kernels)
# ---------------------------------------------------------------------------
def _layer_norm(x, gamma, beta, eps=1e-5):
    mu = jnp.mean(x, axis=-1, keepdims=True)
    xc = x - mu
    var = jnp.mean(xc * xc, axis=-1, keepdims=True)
    return xc * jax.lax.rsqrt(var + eps) * gamma + beta


# ---------------------------------------------------------------------------
# Pallas kernel: the full nn.TransformerDecoder stack (post-norm, ReLU FFN).
# grid = (batch_blocks, num_layers); activation x stays resident in the output
# VMEM block across the layer axis.
# ---------------------------------------------------------------------------
_LAYER_PARAM_NAMES = ("wqkv_sa", "bqkv_sa", "wo_sa", "bo_sa",
                      "wq_ca", "bq_ca", "wkv_ca", "bkv_ca", "wo_ca", "bo_ca",
                      "w1", "b1", "w2", "b2",
                      "g1", "be1", "g2", "be2", "g3", "be3")


def make_decoder_stack_kernel(nhead):
    def kernel(x_ref, mem_ref,
               wqkv_sa_ref, bqkv_sa_ref, wo_sa_ref, bo_sa_ref,
               wq_ca_ref, bq_ca_ref, wkv_ca_ref, bkv_ca_ref, wo_ca_ref, bo_ca_ref,
               w1_ref, b1_ref, w2_ref, b2_ref,
               g1_ref, be1_ref, g2_ref, be2_ref, g3_ref, be3_ref,
               out_ref):
        layer = pl.program_id(1)

        # layer 0: load the embedded tokens into the resident activation block
        @pl.when(layer == 0)
        def _():
            out_ref[...] = x_ref[...]

        x = out_ref[...].astype(jnp.float32)          # (Bb, T, H)
        mem = mem_ref[...].astype(jnp.float32)        # (Bb, S, H)
        Bb, T, H = x.shape
        S = mem.shape[1]
        hd = H // nhead
        scale = 1.0 / math.sqrt(hd)

        # causal mask built in-kernel (no HBM operand, pure VPU work)
        row = jax.lax.broadcasted_iota(jnp.int32, (T, T), 0)
        col = jax.lax.broadcasted_iota(jnp.int32, (T, T), 1)
        causal = jnp.where(col <= row, 0.0, NEG_INF).astype(jnp.float32)   # (T, T)

        def mh_attention(q, k, v, wo, bo, mask):
            # q: (Bb, Tq, H), k/v: (Bb, Tk, H), wo: (H, H), bo: (1, H)
            # Heads unrolled; per-head matmuls are batched over the batch dim.
            # Head concat is avoided: accumulate each head through the matching
            # row-slice of the output projection.
            Tq = q.shape[1]
            out = jnp.zeros((Bb * Tq, H), jnp.float32) + bo
            for h in range(nhead):
                lo = h * hd
                qh = q[:, :, lo:lo + hd] * scale          # fold 1/sqrt(hd) into q
                kh = k[:, :, lo:lo + hd]
                vh = v[:, :, lo:lo + hd]
                s = jnp.einsum("bqd,bkd->bqk", qh, kh,
                               preferred_element_type=jnp.float32)
                if mask is not None:
                    s = s + mask[None]
                s = s - jnp.max(s, axis=-1, keepdims=True)
                p = jnp.exp(s)
                p = p * pl.reciprocal(jnp.sum(p, axis=-1, keepdims=True), approx=True)
                oh = jnp.einsum("bqk,bkd->bqd", p, vh,
                                preferred_element_type=jnp.float32)        # (Bb,Tq,hd)
                out = out + jnp.dot(oh.reshape(Bb * Tq, hd), wo[lo:lo + hd, :],
                                    preferred_element_type=jnp.float32)
            return out.reshape(Bb, Tq, H)

        # --- masked self-attention (fused QKV) + residual + post-LayerNorm ---
        qkv = jnp.dot(x.reshape(Bb * T, H), wqkv_sa_ref[0],
                      preferred_element_type=jnp.float32) + bqkv_sa_ref[0]  # (Bb*T,3H)
        q = qkv[:, 0:H].reshape(Bb, T, H)
        k = qkv[:, H:2 * H].reshape(Bb, T, H)
        v = qkv[:, 2 * H:3 * H].reshape(Bb, T, H)
        sa = mh_attention(q, k, v, wo_sa_ref[0], bo_sa_ref[0], causal)
        x = _layer_norm(x + sa, g1_ref[0], be1_ref[0])

        # --- cross-attention over image/question memory (fused KV) -----------
        q_ca = (jnp.dot(x.reshape(Bb * T, H), wq_ca_ref[0],
                        preferred_element_type=jnp.float32) + bq_ca_ref[0])
        kv = (jnp.dot(mem.reshape(Bb * S, H), wkv_ca_ref[0],
                      preferred_element_type=jnp.float32) + bkv_ca_ref[0])  # (Bb*S,2H)
        kc = kv[:, 0:H].reshape(Bb, S, H)
        vc = kv[:, H:2 * H].reshape(Bb, S, H)
        ca = mh_attention(q_ca.reshape(Bb, T, H), kc, vc,
                          wo_ca_ref[0], bo_ca_ref[0], None)
        x = _layer_norm(x + ca, g2_ref[0], be2_ref[0])

        # --- feed-forward (ReLU) ---------------------------------------------
        h1 = jnp.maximum(
            jnp.dot(x.reshape(Bb * T, H), w1_ref[0],
                    preferred_element_type=jnp.float32) + b1_ref[0], 0.0)
        ff = jnp.dot(h1, w2_ref[0],
                     preferred_element_type=jnp.float32) + b2_ref[0]
        x = _layer_norm(x + ff.reshape(Bb, T, H), g3_ref[0], be3_ref[0])

        out_ref[...] = x.astype(out_ref.dtype)

    return kernel


def decoder_stack(x, memory, layer_params, nhead, *, batch_block=None):
    """Runs all decoder layers in one pallas_call, activations VMEM-resident.

    batch_block: rows-of-batch per grid block.  Default = whole batch (best on
    the single-TensorCore v5e/v6e); set to B//2 on v7x to shard across both TCs.
    """
    B, T, H = x.shape
    S = memory.shape[1]
    L = layer_params["wqkv_sa"].shape[0]
    Bb = B if batch_block is None else batch_block
    assert B % Bb == 0

    w_ops = [layer_params[n] for n in _LAYER_PARAM_NAMES]

    def w_spec(shape):
        return pl.BlockSpec((1,) + tuple(shape[1:]), lambda b, l: (l, 0, 0))

    in_specs = [pl.BlockSpec((Bb, T, H), lambda b, l: (b, 0, 0)),
                pl.BlockSpec((Bb, S, H), lambda b, l: (b, 0, 0))]
    in_specs += [w_spec(w.shape) for w in w_ops]
    out_spec = pl.BlockSpec((Bb, T, H), lambda b, l: (b, 0, 0))

    return pl.pallas_call(
        make_decoder_stack_kernel(nhead),
        out_shape=jax.ShapeDtypeStruct((B, T, H), x.dtype),
        grid=(B // Bb, L),
        in_specs=in_specs,
        out_specs=out_spec,
        compiler_params=pltpu.CompilerParams(
            dimension_semantics=("parallel", "arbitrary")),
    )(x, memory, *w_ops)


# ---------------------------------------------------------------------------
# Pallas kernel: image/question memory projections
#   memory = [W_local(local) | W_global(global)[:,None] | W_q(q)[:,None]]  (dim=1)
# written via disjoint row-slice stores (no concatenate).
# ---------------------------------------------------------------------------
def memory_kernel(local_ref, global_ref, q_ref,
                  wl_ref, bl_ref, wg_ref, bg_ref, wq_ref, bq_ref, out_ref):
    B, S, H = out_ref.shape
    R = S - 2
    proj_loc = jnp.einsum("brl,lh->brh", local_ref[...].astype(jnp.float32),
                          wl_ref[...],
                          preferred_element_type=jnp.float32) + bl_ref[...]   # (B,R,H)
    g = jnp.dot(global_ref[...].astype(jnp.float32), wg_ref[...],
                preferred_element_type=jnp.float32) + bg_ref[...]             # (B,H)
    qv = jnp.dot(q_ref[...].astype(jnp.float32), wq_ref[...],
                 preferred_element_type=jnp.float32) + bq_ref[...]            # (B,H)
    out_ref[:, 0:R, :] = proj_loc.astype(out_ref.dtype)
    out_ref[:, R:R + 1, :] = g[:, None, :].astype(out_ref.dtype)
    out_ref[:, R + 1:R + 2, :] = qv[:, None, :].astype(out_ref.dtype)


def image_question_memory(local_feat, global_feat, question_vectors, params):
    B, R, _ = local_feat.shape
    H = params["wg"].shape[1]
    vmem = pl.BlockSpec(memory_space=pltpu.MemorySpace.VMEM)
    return pl.pallas_call(
        memory_kernel,
        out_shape=jax.ShapeDtypeStruct((B, R + 2, H), jnp.float32),
        in_specs=[vmem] * 9,
        out_specs=vmem,
    )(local_feat, global_feat, question_vectors,
      params["wl"], params["bl"], params["wg"], params["bg"],
      params["wq"], params["bq"])


# ---------------------------------------------------------------------------
# Pallas kernel: vocab projection, tiled over (rows, vocab) with the vocab dim
# padded to a multiple of 128 for lane-dense stores.
# ---------------------------------------------------------------------------
def vocab_kernel(x_ref, w_ref, b_ref, out_ref):
    out_ref[...] = (jnp.dot(x_ref[...], w_ref[...],
                            preferred_element_type=jnp.float32)
                    + b_ref[...]).astype(out_ref.dtype)


def vocab_projection(x, w, b, *, row_block=256, col_block=512):
    B, T, H = x.shape
    V = w.shape[1]
    M = B * T

    Vp = _round_up(V, 128)
    tn = Vp if Vp <= col_block else col_block
    Vp = _round_up(Vp, tn)
    Mp = _round_up(M, 8)
    tm = Mp if Mp <= row_block else row_block
    Mp = _round_up(Mp, tm)

    xf = x.reshape(M, H).astype(jnp.float32)
    if Mp != M:
        xf = jnp.pad(xf, ((0, Mp - M), (0, 0)))
    wp = jnp.pad(w, ((0, 0), (0, Vp - V))) if Vp != V else w
    bp = jnp.pad(b, ((0, 0), (0, Vp - V))) if Vp != V else b

    out = pl.pallas_call(
        vocab_kernel,
        out_shape=jax.ShapeDtypeStruct((Mp, Vp), jnp.float32),
        grid=(Mp // tm, Vp // tn),
        in_specs=[pl.BlockSpec((tm, H), lambda i, j: (i, 0)),
                  pl.BlockSpec((H, tn), lambda i, j: (0, j)),
                  pl.BlockSpec((1, tn), lambda i, j: (0, j))],
        out_specs=pl.BlockSpec((tm, tn), lambda i, j: (i, j)),
        compiler_params=pltpu.CompilerParams(
            dimension_semantics=("parallel", "parallel")),
    )(xf, wp, bp)
    return out[:M, :V].reshape(B, T, V)


# ---------------------------------------------------------------------------
# glue (plain JAX): embedding lookup, positional encoding
# ---------------------------------------------------------------------------
def positional_encoding(T, D):
    pos = jnp.arange(T, dtype=jnp.float32)[:, None]
    div = jnp.exp(jnp.arange(0, D, 2, dtype=jnp.float32) * (-math.log(10000.0) / D))
    ang = pos * div
    pe = jnp.zeros((T, D), jnp.float32)
    pe = pe.at[:, 0::2].set(jnp.sin(ang))
    pe = pe.at[:, 1::2].set(jnp.cos(ang))
    return pe


def teacher_forcing_forward(params, local_feat, global_feat, question_vectors,
                            answers, nhead):
    B, T = answers.shape
    H = params["embedding"].shape[1]
    # embedding lookup + positional encoding (glue; no sqrt(d_model) scaling,
    # matching a PositionalEncoding that only adds PE).
    x = params["embedding"][answers] + positional_encoding(T, H)[None]      # (B,T,H)
    # image/question memory (Pallas)
    memory = image_question_memory(local_feat, global_feat, question_vectors, params)
    # fused transformer decoder stack (Pallas, single launch, layers resident)
    x = decoder_stack(x, memory, params["layers"], nhead)
    # vocab logits (Pallas, tiled lane-dense) -> (B, T, V), matching PyTorch layout
    return vocab_projection(x, params["wv"], params["bv"])


# ---------------------------------------------------------------------------
# deterministic parameter init (shapes follow the module __init__;
# per-layer weights are stacked along a leading layer axis)
# ---------------------------------------------------------------------------
def init_params(key, *, vocab_size, hidden, nhead, dff, num_layers,
                q_dim, local_dim, global_dim):
    del nhead
    keys = iter(jax.random.split(key, 32))

    def rnd(shape, scale=0.05):
        return jax.random.normal(next(keys), shape, jnp.float32) * scale

    H, L = hidden, num_layers
    params = {
        "embedding": rnd((vocab_size, H), 0.1),
        "wl": rnd((local_dim, H)), "bl": rnd((1, H), 0.01),
        "wg": rnd((global_dim, H)), "bg": rnd((1, H), 0.01),
        "wq": rnd((q_dim, H)), "bq": rnd((1, H), 0.01),
        "wv": rnd((H, vocab_size)), "bv": rnd((1, vocab_size), 0.01),
        "layers": {
            "wqkv_sa": rnd((L, H, 3 * H)), "bqkv_sa": rnd((L, 1, 3 * H), 0.01),
            "wo_sa": rnd((L, H, H)), "bo_sa": rnd((L, 1, H), 0.01),
            "wq_ca": rnd((L, H, H)), "bq_ca": rnd((L, 1, H), 0.01),
            "wkv_ca": rnd((L, H, 2 * H)), "bkv_ca": rnd((L, 1, 2 * H), 0.01),
            "wo_ca": rnd((L, H, H)), "bo_ca": rnd((L, 1, H), 0.01),
            "w1": rnd((L, H, dff)), "b1": rnd((L, 1, dff), 0.01),
            "w2": rnd((L, dff, H)), "b2": rnd((L, 1, H), 0.01),
            "g1": jnp.ones((L, 1, H), jnp.float32), "be1": jnp.zeros((L, 1, H), jnp.float32),
            "g2": jnp.ones((L, 1, H), jnp.float32), "be2": jnp.zeros((L, 1, H), jnp.float32),
            "g3": jnp.ones((L, 1, H), jnp.float32), "be3": jnp.zeros((L, 1, H), jnp.float32),
        },
    }
    return params


# ---------------------------------------------------------------------------
if __name__ == "__main__":
    B, T = 2, 8                 # batch, max_answer_length
    H, NHEAD, DFF = 32, 4, 64   # hidden(=embed), heads, feedforward
    NUM_LAYERS = 2
    VOCAB = 50
    Q_DIM, L_DIM, G_DIM = 24, 40, 48
    R = 6                       # number of local image regions -> memory length R+2=8

    key = jax.random.PRNGKey(0)
    kp, k1, k2, k3, k4 = jax.random.split(key, 5)

    params = init_params(kp, vocab_size=VOCAB, hidden=H, nhead=NHEAD, dff=DFF,
                         num_layers=NUM_LAYERS, q_dim=Q_DIM,
                         local_dim=L_DIM, global_dim=G_DIM)

    local_feat = jax.random.normal(k1, (B, R, L_DIM), jnp.float32)
    global_feat = jax.random.normal(k2, (B, G_DIM), jnp.float32)
    question_vectors = jax.random.normal(k3, (B, Q_DIM), jnp.float32)
    answers = jax.random.randint(k4, (B, T), 0, VOCAB, dtype=jnp.int32)

    logits = teacher_forcing_forward(params, local_feat, global_feat,
                                     question_vectors, answers, NHEAD)
    jax.block_until_ready(logits)

    assert logits.shape == (B, T, VOCAB), logits.shape
    assert logits.dtype == jnp.float32
    assert bool(jnp.all(jnp.isfinite(logits)))
    print("KERNEL_OK")
</pallas_src>

<mosaic_0001>
module attributes {stable_mosaic.version = 11 : i64} {
  func.func @memory_kernel(%arg0: memref<2x6x40xf32, #tpu.memory_space<vmem>>, %arg1: memref<2x48xf32, #tpu.memory_space<vmem>>, %arg2: memref<2x24xf32, #tpu.memory_space<vmem>>, %arg3: memref<40x32xf32, #tpu.memory_space<vmem>>, %arg4: memref<1x32xf32, #tpu.memory_space<vmem>>, %arg5: memref<48x32xf32, #tpu.memory_space<vmem>>, %arg6: memref<1x32xf32, #tpu.memory_space<vmem>>, %arg7: memref<24x32xf32, #tpu.memory_space<vmem>>, %arg8: memref<1x32xf32, #tpu.memory_space<vmem>>, %arg9: memref<2x8x32xf32, #tpu.memory_space<vmem>>) attributes {dimension_semantics = [], scalar_prefetch = 0 : i64, scratch_operands = 0 : i64, tpu.core_type = #tpu.core_type<tc>} {
    %c0 = arith.constant 0 : index
    %c0_0 = arith.constant 0 : index
    %c0_1 = arith.constant 0 : index
    %0 = vector.load %arg0[%c0, %c0_0, %c0_1] : memref<2x6x40xf32, #tpu.memory_space<vmem>>, vector<2x6x40xf32>
    %c0_2 = arith.constant 0 : index
    %c0_3 = arith.constant 0 : index
    %1 = vector.load %arg3[%c0_2, %c0_3] : memref<40x32xf32, #tpu.memory_space<vmem>>, vector<40x32xf32>
    "tpu.trace_start"() <{level = 10 : i32, message = "brl,lh->brh"}> : () -> ()
    %cst = arith.constant dense<0.000000e+00> : vector<2x6x32xf32>
    %2 = tpu.matmul %0, %1, %cst {dimension_numbers = #tpu.dot_dimension_numbers<[2], [0], [0, 1], [1], [0, 0, 0, 1, 1, 1], [], []>} : vector<2x6x40xf32>, vector<40x32xf32>, vector<2x6x32xf32> -> vector<2x6x32xf32>
    "tpu.trace_stop"() : () -> ()
    %c0_4 = arith.constant 0 : index
    %c0_5 = arith.constant 0 : index
    %3 = vector.load %arg4[%c0_4, %c0_5] : memref<1x32xf32, #tpu.memory_space<vmem>>, vector<1x32xf32>
    %4 = vector.shape_cast %3 : vector<1x32xf32> to vector<1x1x32xf32>
    %5 = vector.broadcast %4 : vector<1x1x32xf32> to vector<2x6x32xf32>
    %6 = arith.addf %2, %5 : vector<2x6x32xf32>
    %c0_6 = arith.constant 0 : index
    %c0_7 = arith.constant 0 : index
    %7 = vector.load %arg1[%c0_6, %c0_7] : memref<2x48xf32, #tpu.memory_space<vmem>>, vector<2x48xf32>
    %c0_8 = arith.constant 0 : index
    %c0_9 = arith.constant 0 : index
    %8 = vector.load %arg5[%c0_8, %c0_9] : memref<48x32xf32, #tpu.memory_space<vmem>>, vector<48x32xf32>
    %cst_10 = arith.constant dense<0.000000e+00> : vector<2x32xf32>
    %9 = tpu.matmul %7, %8, %cst_10 {dimension_numbers = #tpu.dot_dimension_numbers<[1], [0], [0], [1], [0, 0, 1, 1], [], []>} : vector<2x48xf32>, vector<48x32xf32>, vector<2x32xf32> -> vector<2x32xf32>
    %c0_11 = arith.constant 0 : index
    %c0_12 = arith.constant 0 : index
    %10 = vector.load %arg6[%c0_11, %c0_12] : memref<1x32xf32, #tpu.memory_space<vmem>>, vector<1x32xf32>
    %11 = vector.broadcast %10 : vector<1x32xf32> to vector<2x32xf32>
    %12 = arith.addf %9, %11 : vector<2x32xf32>
    %c0_13 = arith.constant 0 : index
    %c0_14 = arith.constant 0 : index
    %13 = vector.load %arg2[%c0_13, %c0_14] : memref<2x24xf32, #tpu.memory_space<vmem>>, vector<2x24xf32>
    %c0_15 = arith.constant 0 : index
    %c0_16 = arith.constant 0 : index
    %14 = vector.load %arg7[%c0_15, %c0_16] : memref<24x32xf32, #tpu.memory_space<vmem>>, vector<24x32xf32>
    %cst_17 = arith.constant dense<0.000000e+00> : vector<2x32xf32>
    %15 = tpu.matmul %13, %14, %cst_17 {dimension_numbers = #tpu.dot_dimension_numbers<[1], [0], [0], [1], [0, 0, 1, 1], [], []>} : vector<2x24xf32>, vector<24x32xf32>, vector<2x32xf32> -> vector<2x32xf32>
    %c0_18 = arith.constant 0 : index
    %c0_19 = arith.constant 0 : index
    %16 = vector.load %arg8[%c0_18, %c0_19] : memref<1x32xf32, #tpu.memory_space<vmem>>, vector<1x32xf32>
    %17 = vector.broadcast %16 : vector<1x32xf32> to vector<2x32xf32>
    %18 = arith.addf %15, %17 : vector<2x32xf32>
    %c0_20 = arith.constant 0 : index
    %c0_21 = arith.constant 0 : index
    %c0_22 = arith.constant 0 : index
    %19 = vector.load %arg9[%c0_20, %c0_21, %c0_22] : memref<2x8x32xf32, #tpu.memory_space<vmem>>, vector<2x6x32xf32>
    tpu.vector_store %arg9[%c0_20, %c0_21, %c0_22], %6 {strides = array<i32>} : memref<2x8x32xf32, #tpu.memory_space<vmem>>, vector<2x6x32xf32>,
    %20 = vector.shape_cast %12 : vector<2x32xf32> to vector<2x1x32xf32>
    %c0_23 = arith.constant 0 : index
    %c6 = arith.constant 6 : index
    %c0_24 = arith.constant 0 : index
    %21 = vector.load %arg9[%c0_23, %c6, %c0_24] : memref<2x8x32xf32, #tpu.memory_space<vmem>>, vector<2x1x32xf32>
    tpu.vector_store %arg9[%c0_23, %c6, %c0_24], %20 {strides = array<i32>} : memref<2x8x32xf32, #tpu.memory_space<vmem>>, vector<2x1x32xf32>,
    %22 = vector.shape_cast %18 : vector<2x32xf32> to vector<2x1x32xf32>
    %c0_25 = arith.constant 0 : index
    %c7 = arith.constant 7 : index
    %c0_26 = arith.constant 0 : index
    %23 = vector.load %arg9[%c0_25, %c7, %c0_26] : memref<2x8x32xf32, #tpu.memory_space<vmem>>, vector<2x1x32xf32>
    tpu.vector_store %arg9[%c0_25, %c7, %c0_26], %22 {strides = array<i32>} : memref<2x8x32xf32, #tpu.memory_space<vmem>>, vector<2x1x32xf32>,
    return
  }
}

</mosaic_0001>

<llo_original>
// kernel: tpu_custom_call.1
$region0: #{tpu_custom_call.1}
  #allocation0 [shape = 'u32[]', space=smem, size = 0x4, offset = 0x4, fixed_abs, tag = 'smem constant byte address 0x4 - core index']
  #allocation1 [shape = 'u32[144,128]{1,0:T(1,128)}', space=vmem, size = 0x12000, scoped, tag = 'internal scratch']
  %s0 = inlined_call_operand.vmem [shape: f32[2,6,40], index: 0, kind: input, shape index: {}]
  %s1 = inlined_call_operand.vmem [shape: f32[2,48], index: 1, kind: input, shape index: {}]
  %s2 = inlined_call_operand.vmem [shape: f32[2,24], index: 2, kind: input, shape index: {}]
  %s3 = inlined_call_operand.vmem [shape: f32[40,32], index: 3, kind: input, shape index: {}]
  %s4 = inlined_call_operand.vmem [shape: f32[1,32], index: 4, kind: input, shape index: {}]
  %s5 = inlined_call_operand.vmem [shape: f32[48,32], index: 5, kind: input, shape index: {}]
  %s6 = inlined_call_operand.vmem [shape: f32[1,32], index: 6, kind: input, shape index: {}]
  %s7 = inlined_call_operand.vmem [shape: f32[24,32], index: 7, kind: input, shape index: {}]
  %s8 = inlined_call_operand.vmem [shape: f32[1,32], index: 8, kind: input, shape index: {}]
  %s9 = inlined_call_operand.hbm [shape: f32[2,8,32], index: 9, kind: output, shape index: {}]
  %s10 = sld [smem:[#allocation0]]
  $region46: #{tpu_custom_call.1} parent=0
    _
  %s12 = ssub.s32 1, %s10
  %s13 = scalar_select 0, %s12, %s10
  $region1: #{tpu_custom_call.1} parent=0
    #allocation2 [shape = 'u8[8192]{0}', space=vmem, size = 0x2000, scoped, tag = 'output window, operand 0, single buffered']
    #allocation3 [shape = 's32[1]{0}', space=sflag, size = 0x4, scoped, tag = 'scoped memory for tpu_custom_call.1']
    %14 = vsyncpa [#allocation3], 0
    // Predicated region
    $region2: #{tpu_custom_call.1} parent=1 // pred_check
      _
    $region3: #{tpu_custom_call.1} parent=1 // pred_check_branch
      %16 = sbr.rel (0) target = $region5
    $region4: #{tpu_custom_call.1} parent=1 // pred_region
      _
    $region5: #{tpu_custom_call.1} parent=1 // pred_fallthru
      _
    // Predicated region
    $region6: #{tpu_custom_call.1} parent=1 // pred_check
      _
    $region7: #{tpu_custom_call.1} parent=1 // pred_check_branch
      %18 = sbr.rel (0) target = $region9
    $region8: #{tpu_custom_call.1} parent=1 // pred_region
      _
    $region9: #{tpu_custom_call.1} parent=1 // pred_fallthru
      _
    // Predicated region
    $region10: #{tpu_custom_call.1} parent=1 // pred_check
      _
    $region11: #{tpu_custom_call.1} parent=1 // pred_check_branch
      %20 = sbr.rel (0) target = $region13
    $region12: #{tpu_custom_call.1} parent=1 // pred_region
      _
    $region13: #{tpu_custom_call.1} parent=1 // pred_fallthru
      _
    // Predicated region
    $region14: #{tpu_custom_call.1} parent=1 // pred_check
      _
    $region15: #{tpu_custom_call.1} parent=1 // pred_check_branch
      %22 = sbr.rel (0) target = $region17
    $region16: #{tpu_custom_call.1} parent=1 // pred_region
      _
    $region17: #{tpu_custom_call.1} parent=1 // pred_fallthru
      _
    // Predicated region
    $region18: #{tpu_custom_call.1} parent=1 // pred_check
      _
    $region19: #{tpu_custom_call.1} parent=1 // pred_check_branch
      %24 = sbr.rel (0) target = $region21
    $region20: #{tpu_custom_call.1} parent=1 // pred_region
      _
    $region21: #{tpu_custom_call.1} parent=1 // pred_fallthru
      _
    // Predicated region
    $region22: #{tpu_custom_call.1} parent=1 // pred_check
      _
    $region23: #{tpu_custom_call.1} parent=1 // pred_check_branch
      %26 = sbr.rel (0) target = $region25
    $region24: #{tpu_custom_call.1} parent=1 // pred_region
      _
    $region25: #{tpu_custom_call.1} parent=1 // pred_fallthru
      _
    // Predicated region
    $region26: #{tpu_custom_call.1} parent=1 // pred_check
      _
    $region27: #{tpu_custom_call.1} parent=1 // pred_check_branch
      %28 = sbr.rel (0) target = $region29
    $region28: #{tpu_custom_call.1} parent=1 // pred_region
      _
    $region29: #{tpu_custom_call.1} parent=1 // pred_fallthru
      _
    // Predicated region
    $region30: #{tpu_custom_call.1} parent=1 // pred_check
      _
    $region31: #{tpu_custom_call.1} parent=1 // pred_check_branch
      %30 = sbr.rel (0) target = $region33
    $region32: #{tpu_custom_call.1} parent=1 // pred_region
      _
    $region33: #{tpu_custom_call.1} parent=1 // pred_fallthru
      _
    // Predicated region
    $region34: #{tpu_custom_call.1} parent=1 // pred_check
      _
    $region35: #{tpu_custom_call.1} parent=1 // pred_check_branch
      %32 = sbr.rel (0) target = $region37
    $region36: #{tpu_custom_call.1} parent=1 // pred_region
      _
    $region37: #{tpu_custom_call.1} parent=1 // pred_fallthru
      _
    %v33 = vld [vmem:[%s0] sm:$0x3f]
    %v34 = vld [vmem:[%s0 + $0x8] sm:$0x3f]
    %v35 = vld [vmem:[%s3] sm:$0xff]
    %v36 = vld [vmem:[%s3 + $0x8] sm:$0xff]
    %v37 = vld [vmem:[%s3 + $0x10] sm:$0xff]
    %v38 = vld [vmem:[%s3 + $0x18] sm:$0xff]
    %v39 = vld [vmem:[%s3 + $0x20] sm:$0xff]
    %v40 = vld [vmem:[%s4] sm:$0x1]
    %v42 = vlaneseq
    %v43 = vshrl.u32 %v42, 7
    %v44 = vsub.s32 0, %v43
    %v45 = vrot.slane %v40, %v44
    %v48 = vcombine.high %v33, %v33
    %v50 = vunpack.c.l.s4 1983009808
    %v51 = vunpack.c.0.s8 %v50
    %v52 = vlaneseq
    %v53 = vshrl.u32 %v52, 7
    %v54 = vsub.s32 %v51, %v53
    %v55 = vrot.slane %v33, %v54
    %v57 = vunpack.c.l.s4 1983009808
    %v58 = vunpack.c.0.s8 %v57
    %v59 = vlaneseq
    %v60 = vshrl.u32 %v59, 7
    %v61 = vsub.s32 %v58, %v60
    %v62 = vrot.slane %v48, %v61
    %v63 = vcombine.high %v55, %v55
    %v64 = vcombine.high %v34, %v34
    %v66 = vunpack.c.l.s4 1983009808
    %v67 = vunpack.c.0.s8 %v66
    %v68 = vlaneseq
    %v69 = vshrl.u32 %v68, 7
    %v70 = vsub.s32 %v67, %v69
    %v71 = vrot.slane %v34, %v70
    %v73 = vunpack.c.l.s4 1983009808
    %v74 = vunpack.c.0.s8 %v73
    %v75 = vlaneseq
    %v76 = vshrl.u32 %v75, 7
    %v77 = vsub.s32 %v74, %v76
    %v78 = vrot.slane %v64, %v77
    %v79 = vcombine.high %v71, %v71
    %v80 = vcombine.high %v45, %v45
    %v82 = vunpack.c.l.s4 1983009808
    %v83 = vunpack.c.0.s8 %v82
    %v84 = vlaneseq
    %v85 = vshrl.u32 %v84, 7
    %v86 = vsub.s32 %v83, %v85
    %v87 = vrot.slane %v45, %v86
    %v89 = vunpack.c.l.s4 1983009808
    %v90 = vunpack.c.0.s8 %v89
    %v91 = vlaneseq
    %v92 = vshrl.u32 %v91, 7
    %v93 = vsub.s32 %v90, %v92
    %v94 = vrot.slane %v80, %v93
    %v95 = vcombine.high %v87, %v87
    %v96 = vcombine.low %v55, %v63
    %v97 = vcombine.low %v62, %v71
    %v99 = vunpack.c.l.s4 1983009808
    %v100 = vunpack.c.0.s8 %v99
    %v101 = vlaneseq
    %v102 = vshrl.u32 %v101, 7
    %v103 = vsub.s32 %v100, %v102
    %v104 = vrot.slane %v96, %v103
    %v106 = vunpack.c.l.s4 1983009808
    %v107 = vunpack.c.0.s8 %v106
    %v108 = vlaneseq
    %v109 = vshrl.u32 %v108, 7
    %v110 = vsub.s32 %v107, %v109
    %v111 = vrot.slane %v97, %v110
    %v112 = vcombine.low %v104, %v111
    %v113 = vcombine.low %v79, %v78
    %v115 = vunpack.c.l.s4 1983009808
    %v116 = vunpack.c.0.s8 %v115
    %v117 = vlaneseq
    %v118 = vshrl.u32 %v117, 7
    %v119 = vsub.s32 %v116, %v118
    %v120 = vrot.slane %v113, %v119
    %v121 = vcombine.low %v87, %v95
    %v122 = vcombine.low %v94, %v87
    %v124 = vunpack.c.l.s4 1983009808
    %v125 = vunpack.c.0.s8 %v124
    %v126 = vlaneseq
    %v127 = vshrl.u32 %v126, 7
    %v128 = vsub.s32 %v125, %v127
    %v129 = vrot.slane %v121, %v128
    %v131 = vunpack.c.l.s4 1983009808
    %v132 = vunpack.c.0.s8 %v131
    %v133 = vlaneseq
    %v134 = vshrl.u32 %v133, 7
    %v135 = vsub.s32 %v132, %v134
    %v136 = vrot.slane %v122, %v135
    %v137 = vcombine.low %v129, %v136
    %v138 = vcombine.low %v95, %v94
    %v140 = vunpack.c.l.s4 1983009808
    %v141 = vunpack.c.0.s8 %v140
    %v142 = vlaneseq
    %v143 = vshrl.u32 %v142, 7
    %v144 = vsub.s32 %v141, %v143
    %v145 = vrot.slane %v138, %v144
    %vm148 = vcmask 326656
    %v149 = vsel %vm148, %v112, 0
    %v151 = vsel %vm148, %v120, 0
    %153 = vmatprep.subr.mxu0 0.0
    %154 = vmatpush1.msra.mxu0 0.0
    %155 = vmatprep.subr.mxu0 0.0
    %156 = vmatpush1.msra.mxu0 0.0
    %157 = vmatprep.subr.mxu0 0.0
    %158 = vmatpush1.msra.mxu0 0.0
    %159 = vmatprep.subr.mxu0 0.0
    %160 = vmatpush1.msra.mxu0 0.0
    %161 = vmatprep.subr.mxu0 0.0
    %162 = vmatpush1.msra.mxu0 0.0
    %163 = vmatprep.subr.mxu0 0.0
    %164 = vmatpush1.msra.mxu0 0.0
    %165 = vmatprep.subr.mxu0 0.0
    %166 = vmatpush1.msra.mxu0 0.0
    %167 = vmatprep.subr.mxu0 0.0
    %168 = vmatpush1.msra.mxu0 0.0
    %169 = vmatprep.subr.mxu0 0.0
    %170 = vmatpush1.msra.mxu0 0.0
    %171 = vmatprep.subr.mxu0 0.0
    %172 = vmatpush1.msra.mxu0 0.0
    %173 = vmatprep.subr.mxu0 0.0
    %174 = vmatpush1.msra.mxu0 0.0
    %175 = vmatprep.subr.mxu0 0.0
    %176 = vmatpush1.msra.mxu0 %v39
    %177 = vmatprep.subr.mxu0 0.0
    %178 = vmatpush1.msra.mxu0 %v38
    %179 = vmatprep.subr.mxu0 0.0
    %180 = vmatpush1.msra.mxu0 %v37
    %181 = vmatprep.subr.mxu0 0.0
    %182 = vmatpush1.msra.mxu0 %v36
    %183 = vmatprep.subr.mxu0 0.0
    %184 = vmatpush1.msra.mxu0 %v35
    %185 = vmatprep.subr.mxu0 0.0
    %186 = vmatpush2.msra.mxu0 0.0
    %187 = vmatprep.subr.mxu0 0.0
    %188 = vmatpush2.msra.mxu0 0.0
    %189 = vmatprep.subr.mxu0 0.0
    %190 = vmatpush2.msra.mxu0 0.0
    %191 = vmatprep.subr.mxu0 0.0
    %192 = vmatpush2.msra.mxu0 0.0
    %193 = vmatprep.subr.mxu0 0.0
    %194 = vmatpush2.msra.mxu0 0.0
    %195 = vmatprep.subr.mxu0 0.0
    %196 = vmatpush2.msra.mxu0 0.0
    %197 = vmatprep.subr.mxu0 0.0
    %198 = vmatpush2.msra.mxu0 0.0
    %199 = vmatprep.subr.mxu0 0.0
    %200 = vmatpush2.msra.mxu0 0.0
    %201 = vmatprep.subr.mxu0 0.0
    %202 = vmatpush2.msra.mxu0 0.0
    %203 = vmatprep.subr.mxu0 0.0
    %204 = vmatpush2.msra.mxu0 0.0
    %205 = vmatprep.subr.mxu0 0.0
    %206 = vmatpush2.msra.mxu0 0.0
    %207 = vmatprep.subr.mxu0 0.0
    %208 = vmatpush2.msra.mxu0 0.0
    %209 = vmatprep.subr.mxu0 0.0
    %210 = vmatpush2.msra.mxu0 0.0
    %211 = vmatprep.subr.mxu0 0.0
    %212 = vmatpush2.msra.mxu0 0.0
    %213 = vmatprep.subr.mxu0 0.0
    %214 = vmatpush2.msra.mxu0 0.0
    %215 = vmatprep.subr.mxu0 0.0
    %216 = vmatpush2.msra.mxu0 0.0
    %217 = vmatprep.mubr.f32.mxu0 0.0
    %218 = vmatmul.mubr.f32.gmra.mxu0 %v149
    %v219 = vpop.f32.mrf.mxu0
    %v220 = vadd.f32 %v137, %v219
    %v221 = vpop.f32.mrf.mxu0
    %222 = vmatprep.mubr.f32.mxu0 0.0
    %223 = vmatmul.mubr.f32.gmra.mxu0 %v151
    %v224 = vpop.f32.mrf.mxu0
    %v225 = vadd.f32 %v145, %v224
    %v226 = vpop.f32.mrf.mxu0
    %227 = vdwg.mxu0
    %v230 = vcombine.high %v220, %v220
    %v232 = vunpack.c.l.s4 1983009808
    %v233 = vunpack.c.0.s8 %v232
    %v234 = vlaneseq
    %v235 = vshrl.u32 %v234, 7
    %v236 = vsub.s32 %v233, %v235
    %v237 = vrot.slane %v220, %v236
    %v239 = vunpack.c.l.s4 1983009808
    %v240 = vunpack.c.0.s8 %v239
    %v241 = vlaneseq
    %v242 = vshrl.u32 %v241, 7
    %v243 = vsub.s32 %v240, %v242
    %v244 = vrot.slane %v230, %v243
    %v245 = vcombine.high %v237, %v237
    %v246 = vcombine.high %v244, %v244
    %v248 = vunpack.c.l.s4 1983009808
    %v249 = vunpack.c.0.s8 %v248
    %v250 = vlaneseq
    %v251 = vshrl.u32 %v250, 7
    %v252 = vsub.s32 %v249, %v251
    %v253 = vrot.slane %v225, %v252
    %v254 = vcombine.high %v253, %v253
    %v255 = vld [vmem:[%s1] sm:$0x3]
    %v256 = vld [vmem:[%s5] sm:$0xff]
    %v257 = vld [vmem:[%s5 + $0x8] sm:$0xff]
    %v258 = vld [vmem:[%s5 + $0x10] sm:$0xff]
    %v259 = vld [vmem:[%s5 + $0x18] sm:$0xff]
    %v260 = vld [vmem:[%s5 + $0x20] sm:$0xff]
    %v261 = vld [vmem:[%s5 + $0x28] sm:$0xff]
    %v262 = vld [vmem:[%s6] sm:$0x1]
    %v264 = vlaneseq
    %v265 = vshrl.u32 %v264, 7
    %v266 = vsub.s32 0, %v265
    %v267 = vrot.slane %v262, %v266
    %vm269 = vcmask 392192
    %v271 = vsel %vm269, %v255, 0
    %273 = vmatprep.subr.mxu0 0.0
    %274 = vmatpush1.msra.mxu0 0.0
    %275 = vmatprep.subr.mxu0 0.0
    %276 = vmatpush1.msra.mxu0 0.0
    %277 = vmatprep.subr.mxu0 0.0
    %278 = vmatpush1.msra.mxu0 0.0
    %279 = vmatprep.subr.mxu0 0.0
    %280 = vmatpush1.msra.mxu0 0.0
    %281 = vmatprep.subr.mxu0 0.0
    %282 = vmatpush1.msra.mxu0 0.0
    %283 = vmatprep.subr.mxu0 0.0
    %284 = vmatpush1.msra.mxu0 0.0
    %285 = vmatprep.subr.mxu0 0.0
    %286 = vmatpush1.msra.mxu0 0.0
    %287 = vmatprep.subr.mxu0 0.0
    %288 = vmatpush1.msra.mxu0 0.0
    %289 = vmatprep.subr.mxu0 0.0
    %290 = vmatpush1.msra.mxu0 0.0
    %291 = vmatprep.subr.mxu0 0.0
    %292 = vmatpush1.msra.mxu0 0.0
    %293 = vmatprep.subr.mxu0 0.0
    %294 = vmatpush1.msra.mxu0 %v261
    %295 = vmatprep.subr.mxu0 0.0
    %296 = vmatpush1.msra.mxu0 %v260
    %297 = vmatprep.subr.mxu0 0.0
    %298 = vmatpush1.msra.mxu0 %v259
    %299 = vmatprep.subr.mxu0 0.0
    %300 = vmatpush1.msra.mxu0 %v258
    %301 = vmatprep.subr.mxu0 0.0
    %302 = vmatpush1.msra.mxu0 %v257
    %303 = vmatprep.subr.mxu0 0.0
    %304 = vmatpush1.msra.mxu0 %v256
    %305 = vmatprep.subr.mxu0 0.0
    %306 = vmatpush2.msra.mxu0 0.0
    %307 = vmatprep.subr.mxu0 0.0
    %308 = vmatpush2.msra.mxu0 0.0
    %309 = vmatprep.subr.mxu0 0.0
    %310 = vmatpush2.msra.mxu0 0.0
    %311 = vmatprep.subr.mxu0 0.0
    %312 = vmatpush2.msra.mxu0 0.0
    %313 = vmatprep.subr.mxu0 0.0
    %314 = vmatpush2.msra.mxu0 0.0
    %315 = vmatprep.subr.mxu0 0.0
    %316 = vmatpush2.msra.mxu0 0.0
    %317 = vmatprep.subr.mxu0 0.0
    %318 = vmatpush2.msra.mxu0 0.0
    %319 = vmatprep.subr.mxu0 0.0
    %320 = vmatpush2.msra.mxu0 0.0
    %321 = vmatprep.subr.mxu0 0.0
    %322 = vmatpush2.msra.mxu0 0.0
    %323 = vmatprep.subr.mxu0 0.0
    %324 = vmatpush2.msra.mxu0 0.0
    %325 = vmatprep.subr.mxu0 0.0
    %326 = vmatpush2.msra.mxu0 0.0
    %327 = vmatprep.subr.mxu0 0.0
    %328 = vmatpush2.msra.mxu0 0.0
    %329 = vmatprep.subr.mxu0 0.0
    %330 = vmatpush2.msra.mxu0 0.0
    %331 = vmatprep.subr.mxu0 0.0
    %332 = vmatpush2.msra.mxu0 0.0
    %333 = vmatprep.subr.mxu0 0.0
    %334 = vmatpush2.msra.mxu0 0.0
    %335 = vmatprep.subr.mxu0 0.0
    %336 = vmatpush2.msra.mxu0 0.0
    %337 = vmatprep.mubr.f32.mxu0 0.0
    %338 = vmatmul.mubr.f32.gmra.mxu0 %v271
    %v339 = vpop.f32.mrf.mxu0
    %v340 = vadd.f32 %v267, %v339
    %v341 = vpop.f32.mrf.mxu0
    %342 = vdwg.mxu0
    %v343 = vld [vmem:[%s2] sm:$0x3]
    %v344 = vld [vmem:[%s7] sm:$0xff]
    %v345 = vld [vmem:[%s7 + $0x8] sm:$0xff]
    %v346 = vld [vmem:[%s7 + $0x10] sm:$0xff]
    %v347 = vld [vmem:[%s8] sm:$0x1]
    %v349 = vlaneseq
    %v350 = vshrl.u32 %v349, 7
    %v351 = vsub.s32 0, %v350
    %v352 = vrot.slane %v347, %v351
    %vm354 = vcmask 195584
    %v356 = vsel %vm354, %v343, 0
    %358 = vmatprep.subr.mxu0 0.0
    %359 = vmatpush1.msra.mxu0 0.0
    %360 = vmatprep.subr.mxu0 0.0
    %361 = vmatpush1.msra.mxu0 0.0
    %362 = vmatprep.subr.mxu0 0.0
    %363 = vmatpush1.msra.mxu0 0.0
    %364 = vmatprep.subr.mxu0 0.0
    %365 = vmatpush1.msra.mxu0 0.0
    %366 = vmatprep.subr.mxu0 0.0
    %367 = vmatpush1.msra.mxu0 0.0
    %368 = vmatprep.subr.mxu0 0.0
    %369 = vmatpush1.msra.mxu0 0.0
    %370 = vmatprep.subr.mxu0 0.0
    %371 = vmatpush1.msra.mxu0 0.0
    %372 = vmatprep.subr.mxu0 0.0
    %373 = vmatpush1.msra.mxu0 0.0
    %374 = vmatprep.subr.mxu0 0.0
    %375 = vmatpush1.msra.mxu0 0.0
    %376 = vmatprep.subr.mxu0 0.0
    %377 = vmatpush1.msra.mxu0 0.0
    %378 = vmatprep.subr.mxu0 0.0
    %379 = vmatpush1.msra.mxu0 0.0
    %380 = vmatprep.subr.mxu0 0.0
    %381 = vmatpush1.msra.mxu0 0.0
    %382 = vmatprep.subr.mxu0 0.0
    %383 = vmatpush1.msra.mxu0 0.0
    %384 = vmatprep.subr.mxu0 0.0
    %385 = vmatpush1.msra.mxu0 %v346
    %386 = vmatprep.subr.mxu0 0.0
    %387 = vmatpush1.msra.mxu0 %v345
    %388 = vmatprep.subr.mxu0 0.0
    %389 = vmatpush1.msra.mxu0 %v344
    %390 = vmatprep.subr.mxu0 0.0
    %391 = vmatpush2.msra.mxu0 0.0
    %392 = vmatprep.subr.mxu0 0.0
    %393 = vmatpush2.msra.mxu0 0.0
    %394 = vmatprep.subr.mxu0 0.0
    %395 = vmatpush2.msra.mxu0 0.0
    %396 = vmatprep.subr.mxu0 0.0
    %397 = vmatpush2.msra.mxu0 0.0
    %398 = vmatprep.subr.mxu0 0.0
    %399 = vmatpush2.msra.mxu0 0.0
    %400 = vmatprep.subr.mxu0 0.0
    %401 = vmatpush2.msra.mxu0 0.0
    %402 = vmatprep.subr.mxu0 0.0
    %403 = vmatpush2.msra.mxu0 0.0
    %404 = vmatprep.subr.mxu0 0.0
    %405 = vmatpush2.msra.mxu0 0.0
    %406 = vmatprep.subr.mxu0 0.0
    %407 = vmatpush2.msra.mxu0 0.0
    %408 = vmatprep.subr.mxu0 0.0
    %409 = vmatpush2.msra.mxu0 0.0
    %410 = vmatprep.subr.mxu0 0.0
    %411 = vmatpush2.msra.mxu0 0.0
    %412 = vmatprep.subr.mxu0 0.0
    %413 = vmatpush2.msra.mxu0 0.0
    %414 = vmatprep.subr.mxu0 0.0
    %415 = vmatpush2.msra.mxu0 0.0
    %416 = vmatprep.subr.mxu0 0.0
    %417 = vmatpush2.msra.mxu0 0.0
    %418 = vmatprep.subr.mxu0 0.0
    %419 = vmatpush2.msra.mxu0 0.0
    %420 = vmatprep.subr.mxu0 0.0
    %421 = vmatpush2.msra.mxu0 0.0
    %422 = vmatprep.mubr.f32.mxu0 0.0
    %423 = vmatmul.mubr.f32.gmra.mxu0 %v356
    %v424 = vpop.f32.mrf.mxu0
    %v425 = vadd.f32 %v352, %v424
    %v426 = vpop.f32.mrf.mxu0
    %427 = vdwg.mxu0
    %v428 = vcombine.low %v237, %v245
    %v430 = vunpack.c.l.s4 1983009808
    %v431 = vunpack.c.0.s8 %v430
    %v432 = vlaneseq
    %v433 = vshrl.u32 %v432, 7
    %v434 = vsub.s32 %v431, %v433
    %v435 = vrot.slane %v428, %v434
    %v437 = vunpack.c.l.s4 1983009808
    %v438 = vunpack.c.0.s8 %v437
    %v439 = vlaneseq
    %v440 = vshrl.u32 %v439, 7
    %v441 = vsub.s32 %v438, %v440
    %v442 = vrot.slane %v244, %v441
    %v443 = vcombine.low %v435, %v442
    %v444 = vcombine.low %v246, %v253
    %v446 = vunpack.c.l.s4 1983009808
    %v447 = vunpack.c.0.s8 %v446
    %v448 = vlaneseq
    %v449 = vshrl.u32 %v448, 7
    %v450 = vsub.s32 %v447, %v449
    %v451 = vrot.slane %v444, %v450
    %v453 = vunpack.c.l.s4 1983009808
    %v454 = vunpack.c.0.s8 %v453
    %v455 = vlaneseq
    %v456 = vshrl.u32 %v455, 7
    %v457 = vsub.s32 %v454, %v456
    %v458 = vrot.slane %v254, %v457
    %v459 = vcombine.low %v451, %v458
    %vm462 = vcmask 259072
    %463 = vst.msk [vmem:[#allocation2] sm:$0x3f] %vm462, %v443
    %464 = vst.msk [vmem:[#allocation2 + $0x8] sm:$0x3f] %vm462, %v459
    %v467 = vunpack.c.l.s4 1966171168
    %v468 = vunpack.c.0.s8 %v467
    %v469 = vlaneseq
    %v470 = vshrl.u32 %v469, 7
    %v471 = vsub.s32 %v468, %v470
    %v472 = vrot.slane %v340, %v471
    %v473 = vcombine.high %v472, %v472
    %v475 = vunpack.c.l.s4 1966171168
    %v476 = vunpack.c.0.s8 %v475
    %v477 = vlaneseq
    %v478 = vshrl.u32 %v477, 7
    %v479 = vsub.s32 %v476, %v478
    %v480 = vrot.slane %v472, %v479
    %v482 = vunpack.c.l.s4 1966171168
    %v483 = vunpack.c.0.s8 %v482
    %v484 = vlaneseq
    %v485 = vshrl.u32 %v484, 7
    %v486 = vsub.s32 %v483, %v485
    %v487 = vrot.slane %v473, %v486
    %vm490 = vcmask 253952
    %491 = vst.msk [vmem:[#allocation2 + $0x6] sm:$0x1] %vm490, %v480
    %492 = vst.msk [vmem:[#allocation2 + $0xe] sm:$0x1] %vm490, %v487
    %v495 = vunpack.c.l.s4 1966171168
    %v496 = vunpack.c.0.s8 %v495
    %v497 = vlaneseq
    %v498 = vshrl.u32 %v497, 7
    %v499 = vsub.s32 %v496, %v498
    %v500 = vrot.slane %v425, %v499
    %v501 = vcombine.high %v500, %v500
    %v503 = vunpack.c.l.s4 1966171168
    %v504 = vunpack.c.0.s8 %v503
    %v505 = vlaneseq
    %v506 = vshrl.u32 %v505, 7
    %v507 = vsub.s32 %v504, %v506
    %v508 = vrot.slane %v500, %v507
    %v510 = vunpack.c.l.s4 1966171168
    %v511 = vunpack.c.0.s8 %v510
    %v512 = vlaneseq
    %v513 = vshrl.u32 %v512, 7
    %v514 = vsub.s32 %v511, %v513
    %v515 = vrot.slane %v501, %v514
    %518 = vst.msk [vmem:[#allocation2 + $0x7] sm:$0x1] %vm490, %v508
    %519 = vst.msk [vmem:[#allocation2 + $0xf] sm:$0x1] %vm490, %v515
    // Predicated region
    $region38: #{tpu_custom_call.1} parent=1 // pred_check
      _
    $region39: #{tpu_custom_call.1} parent=1 // pred_check_branch
      %521 = sbr.rel (0) target = $region41
    $region40: #{tpu_custom_call.1} parent=1 // pred_region
      %s523 = ssub.s32 256, 256
      %524 = vsyncadd [#allocation3], %s523
      %s525 = sshll.u32 [#allocation2], 4
      %s526 = int_to_ptr.vmem [resolvable:$true] %s525
      %531 = dma.vmem_to_hbm [thread:$0]  %s526, 256, %s9, [#allocation3], 128, 128, 8
    $region41: #{tpu_custom_call.1} parent=1 // pred_fallthru
      _
    // Predicated region
    $region42: #{tpu_custom_call.1} parent=1 // pred_check
      _
    $region43: #{tpu_custom_call.1} parent=1 // pred_check_branch
      %533 = sbr.rel (0) target = $region45
    $region44: #{tpu_custom_call.1} parent=1 // pred_region
      %534 = dma.done [#allocation3], 256
    $region45: #{tpu_custom_call.1} parent=1 // pred_fallthru
      _
    %535 = vsyncpa [#allocation3], 1

</llo_original>
